<compile_context>
chip_gen: v6e
topology: v6e:2x2x1
jax: 0.10.0
libtpu: 0.0.40
codegen_flags: <defaults>
</compile_context>

<pallas_src>
import math
from functools import partial

import jax
import jax.numpy as jnp
from jax.experimental import pallas as pl
from jax.experimental.pallas import tpu as pltpu

_LOG2 = math.log(2.0)
_THRESHOLD = 20.0            # PyTorch F.softplus default threshold
_LANE = 128
_TARGET_BLOCK_BYTES = 4 << 20  # ~4 MiB per pipeline buffer, any dtype


def _softplus_kernel(x_ref, o_ref, *, compute_dtype):
    x = x_ref[...].astype(compute_dtype)
    thr = jnp.asarray(_THRESHOLD, compute_dtype)
    # Numerically-stable softplus matching PyTorch semantics exactly:
    #   x > threshold -> x
    #   otherwise     -> log1p(exp(x))
    safe = jnp.minimum(x, thr)                 # avoid overflow in exp
    sp = jnp.where(x > thr, x, jnp.log1p(jnp.exp(safe)))
    o_ref[...] = (sp - jnp.asarray(_LOG2, compute_dtype)).astype(o_ref.dtype)


def _softplus_jnp(x, compute_dtype):
    """Plain-JAX path for tiny / ragged tails (same numerics as the kernel)."""
    xf = x.astype(compute_dtype)
    thr = jnp.asarray(_THRESHOLD, compute_dtype)
    sp = jnp.where(xf > thr, xf, jnp.log1p(jnp.exp(jnp.minimum(xf, thr))))
    return (sp - jnp.asarray(_LOG2, compute_dtype)).astype(x.dtype)


def _round_up(a, b):
    return ((a + b - 1) // b) * b


def softplus_minus_log2(x, *, fast_low_precision_math=False):
    """Applies F.softplus(x) - log(2) elementwise via a Pallas TPU kernel.

    Accepts any shape (e.g. NCHW). Returns an array of the same shape/dtype.
    `fast_low_precision_math=True` keeps the transcendental math in bf16 for
    bf16 inputs (faster on v6e/v7x, slightly less precise than PyTorch).
    """
    orig_shape = x.shape
    orig_dtype = x.dtype

    flat = x.reshape(-1)
    n = flat.shape[0]
    if n == 0:
        return x

    # Sublane alignment: 8 rows for 32-bit, 16 for 16-bit, 32 for 8-bit dtypes.
    itemsize = jnp.dtype(orig_dtype).itemsize
    sub = {4: 8, 2: 16, 1: 32}.get(itemsize, 8)
    tile_elems = _LANE * sub

    # Optional bf16 transcendental path (v6e/v7x native bf16 EUP).
    compute_dtype = (
        jnp.bfloat16
        if (fast_low_precision_math and orig_dtype == jnp.bfloat16)
        else jnp.float32
    )

    n_tail = n % tile_elems
    n_main = n - n_tail

    out_parts = []

    if n_main:
        rows = n_main // _LANE
        x2d = flat[:n_main].reshape(rows, _LANE)

        # Bytes-based target block (~4 MiB / buffer), sublane-aligned.
        target_rows = max(sub, (_TARGET_BLOCK_BYTES // (_LANE * itemsize)) // sub * sub)
        # Keep >= 4 grid steps for mid-sized inputs so each v7x core pipelines.
        block_rows = max(sub, min(target_rows, rows, _round_up(pl.cdiv(rows, 4), sub)))
        grid = (pl.cdiv(rows, block_rows),)

        out2d = pl.pallas_call(
            partial(_softplus_kernel, compute_dtype=compute_dtype),
            out_shape=jax.ShapeDtypeStruct((rows, _LANE), orig_dtype),
            grid_spec=pltpu.PrefetchScalarGridSpec(
                num_scalar_prefetch=0,
                grid=grid,
                in_specs=[pl.BlockSpec((block_rows, _LANE), lambda i: (i, 0))],
                out_specs=pl.BlockSpec((block_rows, _LANE), lambda i: (i, 0)),
            ),
            compiler_params=pltpu.CompilerParams(
                dimension_semantics=("parallel",),
                vmem_limit_bytes=32 << 20,
            ),
            cost_estimate=pl.CostEstimate(
                flops=5 * n_main,
                transcendentals=2 * n_main,
                bytes_accessed=2 * n_main * itemsize,
            ),
        )(x2d)
        out_parts.append(out2d.reshape(-1))

    if n_tail:
        # Tiny ragged tail (< 128*sub elements): compute in plain fused jnp
        # instead of paying full-array pad/slice HBM passes.
        out_parts.append(_softplus_jnp(flat[n_main:], compute_dtype))

    out_flat = out_parts[0] if len(out_parts) == 1 else jnp.concatenate(out_parts)
    return out_flat.reshape(orig_shape)


def _reference(x):
    xf = x.astype(jnp.float32)
    sp = jnp.where(
        xf > _THRESHOLD, xf, jnp.log1p(jnp.exp(jnp.minimum(xf, _THRESHOLD)))
    )
    return sp - _LOG2


if __name__ == "__main__":
    key = jax.random.PRNGKey(0)
    k1, k2 = jax.random.split(key)

    # 1) NCHW input, matching PyTorch conventions (batch=2, channels=4, 16x16).
    #    numel is a multiple of 128*8 -> aligned fast path (kernel only).
    x = jax.random.normal(k1, (2, 4, 16, 16), dtype=jnp.float32) * 5.0
    y = jax.block_until_ready(softplus_minus_log2(x))
    assert y.shape == x.shape and y.dtype == x.dtype
    assert jnp.allclose(y, _reference(x), atol=1e-5, rtol=1e-5)

    # 2) Ragged numel -> aligned-prefix kernel + plain-jnp tail + concat.
    x2 = jax.random.normal(k2, (2, 4, 17, 16), dtype=jnp.float32) * 5.0
    y2 = jax.block_until_ready(softplus_minus_log2(x2))
    assert y2.shape == x2.shape and y2.dtype == x2.dtype
    assert jnp.allclose(y2, _reference(x2), atol=1e-5, rtol=1e-5)

    # 3) bf16 I/O with default f32 math (PyTorch-matching accumulate-in-float).
    xb = x.astype(jnp.bfloat16)
    yb = jax.block_until_ready(softplus_minus_log2(xb))
    assert yb.shape == xb.shape and yb.dtype == xb.dtype
    assert jnp.allclose(yb.astype(jnp.float32), _reference(xb), atol=2e-2, rtol=2e-2)

    print("KERNEL_OK")
</pallas_src>

<mosaic_0001>
module attributes {stable_mosaic.version = 11 : i64} {
  func.func @_softplus_kernel(%arg0: i32, %arg1: memref<8x128xf32, #tpu.memory_space<vmem>>, %arg2: memref<8x128xf32, #tpu.memory_space<vmem>>) attributes {dimension_semantics = [#tpu.dimension_semantics<parallel>], iteration_bounds = array<i64: 2>, scalar_prefetch = 0 : i64, scratch_operands = 0 : i64, tpu.core_type = #tpu.core_type<tc>, window_params = [{transform_indices = @transform_0, window_bounds = array<i64: 8, 128>}, {transform_indices = @transform_1, window_bounds = array<i64: 8, 128>}]} {
    %c0 = arith.constant 0 : index
    %c0_0 = arith.constant 0 : index
    %0 = vector.load %arg1[%c0, %c0_0] : memref<8x128xf32, #tpu.memory_space<vmem>>, vector<8x128xf32>
    %cst = arith.constant 2.000000e+01 : f32
    %1 = vector.broadcast %cst : f32 to vector<8x128xf32>
    %2 = arith.minimumf %0, %1 : vector<8x128xf32>
    %cst_1 = arith.constant 2.000000e+01 : f32
    %3 = vector.broadcast %cst_1 : f32 to vector<8x128xf32>
    %4 = arith.cmpf ogt, %0, %3 : vector<8x128xf32>
    %5 = math.exp %2 : vector<8x128xf32>
    %6 = math.log1p %5 : vector<8x128xf32>
    %7 = arith.select %4, %0, %6 : vector<8x128xi1>, vector<8x128xf32>
    %cst_2 = arith.constant 0.693147182 : f32
    %8 = vector.broadcast %cst_2 : f32 to vector<8x128xf32>
    %9 = arith.subf %7, %8 : vector<8x128xf32>
    %c0_3 = arith.constant 0 : index
    %c0_4 = arith.constant 0 : index
    %10 = vector.load %arg2[%c0_3, %c0_4] : memref<8x128xf32, #tpu.memory_space<vmem>>, vector<8x128xf32>
    tpu.vector_store %arg2[%c0_3, %c0_4], %9 {strides = array<i32>} : memref<8x128xf32, #tpu.memory_space<vmem>>, vector<8x128xf32>,
    return
  }
  func.func @transform_0(%arg0: i32) -> (i32, i32) {
    %c0_i32 = arith.constant 0 : i32
    %c0_i32_0 = arith.constant 0 : i32
    return %arg0, %c0_i32 : i32, i32
  }
  func.func @transform_1(%arg0: i32) -> (i32, i32) {
    %c0_i32 = arith.constant 0 : i32
    %c0_i32_0 = arith.constant 0 : i32
    return %arg0, %c0_i32 : i32, i32
  }
}

</mosaic_0001>

<llo_original>
// kernel: tpu_custom_call.1
$region0: #{tpu_custom_call.1}
  #allocation0 [shape = 'u32[]', space=smem, size = 0x4, offset = 0x4, fixed_abs, tag = 'smem constant byte address 0x4 - core index']
  #allocation1 [shape = 'u32[144,128]{1,0:T(1,128)}', space=vmem, size = 0x12000, scoped, tag = 'internal scratch']
  %s0 = inlined_call_operand.hbm [shape: f32[16,128], index: 0, kind: input, shape index: {}]
  %s1 = inlined_call_operand.hbm [shape: f32[16,128], index: 1, kind: output, shape index: {}]
  %s2 = sld [smem:[#allocation0]]
  $region41: #{tpu_custom_call.1} parent=0
    _
  %s4 = ssub.s32 1, %s2
  %s5 = scalar_select 0, %s4, %s2
  $region1: #{tpu_custom_call.1} parent=0
    #allocation2 [shape = 'u8[8192]{0}', space=vmem, size = 0x2000, scoped, tag = 'input window, operand 0']
    #allocation3 [shape = 's32[2]{0}', space=sflag, size = 0x8, scoped, tag = 'scoped memory for tpu_custom_call.1']
    #allocation4 [shape = 's32[2]{0}', space=sflag, size = 0x8, scoped, tag = 'scoped memory for tpu_custom_call.1']
    #allocation5 [shape = 'u8[8192]{0}', space=vmem, size = 0x2000, scoped, tag = 'output window, operand 0']
    %6 = vsyncpa [#allocation3], 0
    %s7 = scalar_lea.sflag [#allocation3], 1
    %8 = vsyncpa %s7, 0
    %9 = vsyncpa [#allocation4], 0
    %s10 = scalar_lea.sflag [#allocation4], 1
    %11 = vsyncpa %s10, 0
    loop: start=0, step=1, limit=4
    $region2: #{tpu_custom_call.1} parent=1 // loop_pre_header
      _
    $region3: #{tpu_custom_call.1} parent=1 // loop_header
      %s13 = sphi 0, %s17
      %p14 = scmp.ge.s32.totalorder %s13, 4
      %s23 = sphi 0, %s25
      %s26 = sphi 0, %s23
      %s27 = sphi 0, %s26
      %s43 = sphi 0, %s27
      %s49 = sphi 0, %s51
      %s52 = sphi 0, %s49
      %s53 = sphi 0, %s52
      %s69 = sphi 0, %s53
    $region4: #{tpu_custom_call.1} parent=1 // loop_header_branch
      %16 = sbr.rel (%p14) target = $region8
    $region5: #{tpu_custom_call.1} parent=1 // loop_body
      %s18 = ssub.s32 %s13, 1
      %s19 = ssub.s32 %s13, 2
      %s20 = sadd.s32 %s13, 1
      %s21 = ssub.s32 %s13, %s20
      %p22 = scmp.eq.s32.totalorder %s21, 0
      %s24 = sadd.s32 %s23, 1
      %s25 = scalar_select %p22, %s23, %s24
      %p28 = pneg %p22
      %p29 = scmp.eq.s32.totalorder %s13, 1
      %p30 = por %p28, %p29
      %p31 = scmp.ne.s32.totalorder %s23, %s26
      %p32 = scmp.eq.s32.totalorder %s13, 0
      %p33 = por %p31, %p32
      %p34 = scmp.ne.s32.totalorder %s23, %s26
      %p35 = scmp.eq.s32.totalorder %s18, 1
      %p36 = por %p34, %p35
      %p37 = scmp.ne.s32.totalorder %s26, %s27
      %p38 = scmp.eq.s32.totalorder %s18, 0
      %p39 = por %p37, %p38
      %p40 = scmp.ne.s32.totalorder %s26, %s27
      %p41 = scmp.eq.s32.totalorder %s19, 1
      %p42 = por %p40, %p41
      %p44 = scmp.ne.s32.totalorder %s27, %s43
      %p45 = scmp.eq.s32.totalorder %s19, 0
      %p46 = por %p44, %p45
      %s47 = ssub.s32 %s13, %s20
      %p48 = scmp.eq.s32.totalorder %s47, 0
      %s50 = sadd.s32 %s49, 1
      %s51 = scalar_select %p48, %s49, %s50
      %p54 = pneg %p48
      %p55 = scmp.eq.s32.totalorder %s13, 1
      %p56 = por %p54, %p55
      %p57 = scmp.ne.s32.totalorder %s49, %s52
      %p58 = scmp.eq.s32.totalorder %s13, 0
      %p59 = por %p57, %p58
      %p60 = scmp.ne.s32.totalorder %s49, %s52
      %p61 = scmp.eq.s32.totalorder %s18, 1
      %p62 = por %p60, %p61
      %p63 = scmp.ne.s32.totalorder %s52, %s53
      %p64 = scmp.eq.s32.totalorder %s18, 0
      %p65 = por %p63, %p64
      %p66 = scmp.ne.s32.totalorder %s52, %s53
      %p67 = scmp.eq.s32.totalorder %s19, 1
      %p68 = por %p66, %p67
      %p70 = scmp.ne.s32.totalorder %s53, %s69
      %p71 = scmp.eq.s32.totalorder %s19, 0
      %p72 = por %p70, %p71
      %p73 = scmp.le.s32.totalorder 1, %s13
      %p74 = scmp.lt.s32.totalorder %s13, 3
      %p75 = pnand %p73, %p74
      %p76 = pneg %p75
      // Predicated region
      $region9: #{tpu_custom_call.1} parent=5 // pred_check
        _
      $region10: #{tpu_custom_call.1} parent=5 // pred_check_branch
        %78 = sbr.rel (%p75) target = $region12
      $region11: #{tpu_custom_call.1} parent=5 // pred_region
        %s79 = ssub.s32 %s13, 1
      $region12: #{tpu_custom_call.1} parent=5 // pred_fallthru
        _
      %p80 = scmp.lt.s32.totalorder %s13, 2
      // Predicated region
      $region13: #{tpu_custom_call.1} parent=5 // pred_check
        %p81 = pneg %p80
      $region14: #{tpu_custom_call.1} parent=5 // pred_check_branch
        %83 = sbr.rel (%p81) target = $region16
      $region15: #{tpu_custom_call.1} parent=5 // pred_region
        // Predicated region
        $region17: #{tpu_custom_call.1} parent=15 // pred_check
          %p84 = pneg %p33
        $region18: #{tpu_custom_call.1} parent=15 // pred_check_branch
          %86 = sbr.rel (%p84) target = $region20
        $region19: #{tpu_custom_call.1} parent=15 // pred_region
          %s87 = sand.u32 %s23, 1
          %s88 = scalar_lea.sflag [#allocation3], %s87
          %s89 = sand.u32 %s23, 1
          %s90 = smul.addr %s89, 8
          %s91 = scalar_lea.vmem [#allocation2], %s90
          %s93 = ssub.s32 128, 128
          %94 = vsyncadd %s88, %s93
          %s95 = smul.addr %s13, 128
          %s96 = scalar_lea.hbm %s0, %s95
          %s98 = sshll.u32 %s91, 4
          %s99 = int_to_ptr.vmem [resolvable:$true] %s98
          %101 = dma.hbm_to_vmem [thread:$0]  %s96, 128, %s99, %s88
        $region20: #{tpu_custom_call.1} parent=15 // pred_fallthru
          _
      $region16: #{tpu_custom_call.1} parent=5 // pred_fallthru
        _
      %p102 = scmp.le.s32.totalorder 1, %s13
      %p103 = scmp.lt.s32.totalorder %s13, 3
      %p104 = pnand %p102, %p103
      %p105 = pneg %p104
      // Predicated region
      $region21: #{tpu_custom_call.1} parent=5 // pred_check
        _
      $region22: #{tpu_custom_call.1} parent=5 // pred_check_branch
        %107 = sbr.rel (%p104) target = $region24
      $region23: #{tpu_custom_call.1} parent=5 // pred_region
        %s108 = ssub.s32 %s13, 1
        %s109 = sand.u32 %s26, 1
        %s110 = scalar_lea.sflag [#allocation3], %s109
        %s111 = sand.u32 %s26, 1
        %s112 = smul.addr %s111, 8
        %s113 = scalar_lea.vmem [#allocation2], %s112
        // Predicated region
        $region25: #{tpu_custom_call.1} parent=23 // pred_check
          %p114 = pneg %p39
        $region26: #{tpu_custom_call.1} parent=23 // pred_check_branch
          %116 = sbr.rel (%p114) target = $region28
        $region27: #{tpu_custom_call.1} parent=23 // pred_region
          %117 = dma.done %s110, 128
        $region28: #{tpu_custom_call.1} parent=23 // pred_fallthru
          _
        %s118 = sand.u32 %s26, 1
        %s119 = scalar_lea.sflag [#allocation3], %s118
        %s120 = sand.u32 %s26, 1
        %s121 = smul.addr %s120, 8
        %s122 = scalar_lea.vmem [#allocation2], %s121
        %p123 = pneg %p39
        %p124 = pneg %p36
        %p125 = pneg %p65
        %p126 = pneg %p62
        %s127 = sand.u32 %s52, 1
        %s128 = scalar_lea.sflag [#allocation4], %s127
        %s129 = sand.u32 %s52, 1
        %s130 = smul.addr %s129, 8
        %s131 = scalar_lea.vmem [#allocation5], %s130
        %v132 = vld [vmem:[%s113] sm:$0xff]
        %v133 = vmin.f32 %v132, 20.0
        %vm134 = vcmp.gt.f32.partialorder %v132, 20.0
        %v135 = vmul.f32 %v133, 1.442695
        %v136 = vpow.pop %v135
        %v137 = vadd.f32 %v136, 1.0
        %v138 = vlog2.pop %v137
        %v139 = vmul.f32 %v138, 0.6931472
        %v140 = vmul.f32 -0.5, %v136
        %v141 = vadd.f32 %v140, 1.0
        %v142 = vmul.f32 %v141, %v136
        %v143 = vand.u32 2147483647, %v136
        %vm144 = vcmp.lt.f32.partialorder %v143, 0.0004427343
        %v145 = vsel %vm144, %v142, %v139
        %v146 = vsel %vm134, %v132, %v145
        %v147 = vsub.f32 %v146, 0.6931472
        %148 = vst [vmem:[%s131] sm:$0xff] %v147
        %s149 = sand.u32 %s52, 1
        %s150 = scalar_lea.sflag [#allocation4], %s149
        %s151 = sand.u32 %s52, 1
        %s152 = smul.addr %s151, 8
        %s153 = scalar_lea.vmem [#allocation5], %s152
        // Predicated region
        $region29: #{tpu_custom_call.1} parent=23 // pred_check
          %p154 = pneg %p62
        $region30: #{tpu_custom_call.1} parent=23 // pred_check_branch
          %156 = sbr.rel (%p154) target = $region32
        $region31: #{tpu_custom_call.1} parent=23 // pred_region
          %s158 = ssub.s32 128, 128
          %159 = vsyncadd %s150, %s158
          %s160 = smul.addr %s18, 128
          %s161 = scalar_lea.hbm %s1, %s160
          %s163 = sshll.u32 %s153, 4
          %s164 = int_to_ptr.vmem [resolvable:$true] %s163
          %166 = dma.vmem_to_hbm [thread:$0]  %s164, 128, %s161, %s150
        $region32: #{tpu_custom_call.1} parent=23 // pred_fallthru
          _
      $region24: #{tpu_custom_call.1} parent=5 // pred_fallthru
        _
      %p167 = scmp.le.s32.totalorder 2, %s13
      // Predicated region
      $region33: #{tpu_custom_call.1} parent=5 // pred_check
        %p168 = pneg %p167
      $region34: #{tpu_custom_call.1} parent=5 // pred_check_branch
        %170 = sbr.rel (%p168) target = $region36
      $region35: #{tpu_custom_call.1} parent=5 // pred_region
        %s171 = ssub.s32 %s13, 2
        // Predicated region
        $region37: #{tpu_custom_call.1} parent=35 // pred_check
          %p172 = pneg %p68
        $region38: #{tpu_custom_call.1} parent=35 // pred_check_branch
          %174 = sbr.rel (%p172) target = $region40
        $region39: #{tpu_custom_call.1} parent=35 // pred_region
          %s175 = sand.u32 %s53, 1
          %s176 = scalar_lea.sflag [#allocation4], %s175
          %s177 = sand.u32 %s53, 1
          %s178 = smul.addr %s177, 8
          %s179 = scalar_lea.vmem [#allocation5], %s178
          %180 = dma.done %s176, 128
        $region40: #{tpu_custom_call.1} parent=35 // pred_fallthru
          _
      $region36: #{tpu_custom_call.1} parent=5 // pred_fallthru
        _
    $region6: #{tpu_custom_call.1} parent=1 // loop_footer
      %s17 = sadd.s32 1, %s13
    $region7: #{tpu_custom_call.1} parent=1 // loop_footer_branch
      %12 = sbr.rel target = $region3
    $region8: #{tpu_custom_call.1} parent=1 // loop_exit
      _
    %181 = vsyncpa [#allocation3], 1
    %s182 = scalar_lea.sflag [#allocation3], 1
    %183 = vsyncpa %s182, 1
    %184 = vsyncpa [#allocation4], 1
    %s185 = scalar_lea.sflag [#allocation4], 1
    %186 = vsyncpa %s185, 1

</llo_original>
